<compile_context>
chip_gen: v7x
topology: tpu7x:2x2x1
jax: 0.10.0
libtpu: 0.0.40
codegen_flags: <defaults>
</compile_context>

<pallas_src>
import functools

import jax
import jax.numpy as jnp
import numpy as np
from jax.experimental import pallas as pl
from jax.experimental.pallas import tpu as pltpu

LN_EPS = 1e-5  # F.layer_norm default (the naive impl does NOT pass self.eps)


def _round_up(v: int, m: int) -> int:
    return (v + m - 1) // m * m


def modfc_kernel(x_ref, ctx_ref, swt_ref, wt_ref, b_ref, o_ref, *, in_true: int):
    # x_ref:   [TN, INP]    input rows (zero-padded features)
    # ctx_ref: [TN, CTXP]   context rows (zero-padded features)
    # swt_ref: [CTXP, INP]  scale weight, pre-transposed & zero-padded
    # wt_ref:  [INP, OUTP]  native weight, pre-transposed & zero-padded
    # b_ref:   [1, OUTP]    native bias (zero-padded)
    # o_ref:   [TN, OUTP]   output rows
    ctx = ctx_ref[...]

    # scale = context @ scale_W^T   -> [TN, INP]   (MXU, no transpose needed)
    s = jnp.dot(ctx, swt_ref[...], preferred_element_type=jnp.float32)

    # LayerNorm over the TRUE in_features width (padded columns of s are exactly
    # zero, so one-pass sums over the padded width equal the true-width sums).
    inv_n = jnp.float32(1.0 / in_true)
    s_sum = jnp.sum(s, axis=-1, keepdims=True)
    s_sq = jnp.sum(s * s, axis=-1, keepdims=True)
    mean = s_sum * inv_n
    var = s_sq * inv_n - mean * mean
    s_norm = (s - mean) * jax.lax.rsqrt(var + LN_EPS)

    # Modulate input and apply the native linear layer (MXU).
    # Padded x columns are zero, and padded native_w rows are zero, so padding
    # never contaminates the contraction.
    xm = x_ref[...] * s_norm
    out = jnp.dot(xm, wt_ref[...], preferred_element_type=jnp.float32)
    o_ref[...] = (out + b_ref[...]).astype(o_ref.dtype)


def modfc_forward(x, context, scale_w, native_w, native_b, *, row_tile=512):
    """x: [..., IN], context: [..., CTX] -> [..., OUT]."""
    lead_shape = x.shape[:-1]
    in_features = x.shape[-1]
    ctx_features = context.shape[-1]
    out_features = native_w.shape[0]

    n = int(np.prod(lead_shape)) if lead_shape else 1

    # Lane-dense padded feature dims (multiples of 128).
    inp = _round_up(in_features, 128)
    ctxp = _round_up(ctx_features, 128)
    outp = _round_up(out_features, 128)

    # Row tile: multiple of 8, capped by the (padded) row count.
    tn = min(int(row_tile), _round_up(n, 8))
    tn = _round_up(tn, 8)
    npad = _round_up(n, tn)

    # Zero-pad activations and pre-transposed weights in the wrapper (one-time
    # HBM layout work; exact w.r.t. the unpadded computation).
    x2 = jnp.zeros((npad, inp), x.dtype).at[:n, :in_features].set(
        x.reshape(n, in_features))
    c2 = jnp.zeros((npad, ctxp), context.dtype).at[:n, :ctx_features].set(
        context.reshape(n, ctx_features))
    swt = jnp.zeros((ctxp, inp), scale_w.dtype).at[:ctx_features, :in_features].set(
        scale_w.T)
    wt = jnp.zeros((inp, outp), native_w.dtype).at[:in_features, :out_features].set(
        native_w.T)
    b2 = jnp.zeros((1, outp), native_b.dtype).at[:, :out_features].set(
        native_b.reshape(1, out_features))

    grid = (npad // tn,)

    out2 = pl.pallas_call(
        functools.partial(modfc_kernel, in_true=in_features),
        out_shape=jax.ShapeDtypeStruct((npad, outp), x.dtype),
        grid=grid,
        in_specs=[
            pl.BlockSpec((tn, inp), lambda i: (i, 0)),       # x tile
            pl.BlockSpec((tn, ctxp), lambda i: (i, 0)),      # context tile
            pl.BlockSpec((ctxp, inp), lambda i: (0, 0)),     # scale_W^T (resident)
            pl.BlockSpec((inp, outp), lambda i: (0, 0)),     # native_W^T (resident)
            pl.BlockSpec((1, outp), lambda i: (0, 0)),       # bias (resident)
        ],
        out_specs=pl.BlockSpec((tn, outp), lambda i: (i, 0)),
        compiler_params=pltpu.CompilerParams(
            dimension_semantics=("parallel",),               # shards across v7x's 2 TCs
        ),
    )(x2, c2, swt, wt, b2)

    return out2[:n, :out_features].reshape(*lead_shape, out_features)


def _ref_forward(x, context, scale_w, native_w, native_b):
    # Pure-JAX reference of the PyTorch naive implementation.
    s = jnp.einsum("...c,ic->...i", context, scale_w)
    mean = jnp.mean(s, axis=-1, keepdims=True)
    var = jnp.mean((s - mean) ** 2, axis=-1, keepdims=True)
    s = (s - mean) / jnp.sqrt(var + LN_EPS)
    return jnp.einsum("...j,ij->...i", x * s, native_w) + native_b


if __name__ == "__main__":
    # Small shapes consistent with the module's forward.
    B, S = 2, 8
    IN_FEATURES, OUT_FEATURES, CTX_FEATURES = 32, 64, 16

    key = jax.random.PRNGKey(0)
    k_x, k_ctx, k_w, k_sw = jax.random.split(key, 4)

    x = jax.random.normal(k_x, (B, S, IN_FEATURES), dtype=jnp.float32)
    context = jax.random.normal(k_ctx, (B, S, CTX_FEATURES), dtype=jnp.float32)

    # native_weight: kaiming_uniform_(a=sqrt(5)) -> U(-1/sqrt(fan_in), 1/sqrt(fan_in))
    bound_w = 1.0 / np.sqrt(IN_FEATURES)
    native_w = jax.random.uniform(
        k_w, (OUT_FEATURES, IN_FEATURES), minval=-bound_w, maxval=bound_w,
        dtype=jnp.float32)
    # native_bias initialized to zeros in the module
    native_b = jnp.zeros((OUT_FEATURES,), dtype=jnp.float32)
    # scale = nn.Linear(context_features, in_features, bias=False) default init
    bound_s = 1.0 / np.sqrt(CTX_FEATURES)
    scale_w = jax.random.uniform(
        k_sw, (IN_FEATURES, CTX_FEATURES), minval=-bound_s, maxval=bound_s,
        dtype=jnp.float32)

    out = modfc_forward(x, context, scale_w, native_w, native_b)
    out = jax.block_until_ready(out)

    ref = _ref_forward(x, context, scale_w, native_w, native_b)
    np.testing.assert_allclose(np.asarray(out), np.asarray(ref),
                               rtol=1e-5, atol=1e-5)

    # TODO(synk): activation is None in the module's default config (identity);
    # a non-None activation would be a one-line elementwise add in the kernel.
    print("KERNEL_OK")
</pallas_src>

<mosaic_0001>
module attributes {stable_mosaic.version = 11 : i64} {
  func.func @modfc_kernel(%arg0: i32, %arg1: memref<16x128xf32, #tpu.memory_space<vmem>>, %arg2: memref<16x128xf32, #tpu.memory_space<vmem>>, %arg3: memref<128x128xf32, #tpu.memory_space<vmem>>, %arg4: memref<128x128xf32, #tpu.memory_space<vmem>>, %arg5: memref<1x128xf32, #tpu.memory_space<vmem>>, %arg6: memref<16x128xf32, #tpu.memory_space<vmem>>) attributes {dimension_semantics = [#tpu.dimension_semantics<parallel>], iteration_bounds = array<i64: 1>, scalar_prefetch = 0 : i64, scratch_operands = 0 : i64, tpu.core_type = #tpu.core_type<tc>, window_params = [{transform_indices = @transform_0, window_bounds = array<i64: 16, 128>}, {transform_indices = @transform_1, window_bounds = array<i64: 16, 128>}, {pipeline_mode = #tpu.pipeline_mode<synchronous>, transform_indices = @transform_2, window_bounds = array<i64: 128, 128>}, {pipeline_mode = #tpu.pipeline_mode<synchronous>, transform_indices = @transform_3, window_bounds = array<i64: 128, 128>}, {pipeline_mode = #tpu.pipeline_mode<synchronous>, transform_indices = @transform_4, window_bounds = array<i64: 1, 128>}, {transform_indices = @transform_5, window_bounds = array<i64: 16, 128>}]} {
    %c0 = arith.constant 0 : index
    %c0_0 = arith.constant 0 : index
    %0 = vector.load %arg2[%c0, %c0_0] : memref<16x128xf32, #tpu.memory_space<vmem>>, vector<16x128xf32>
    %c0_1 = arith.constant 0 : index
    %c0_2 = arith.constant 0 : index
    %1 = vector.load %arg3[%c0_1, %c0_2] : memref<128x128xf32, #tpu.memory_space<vmem>>, vector<128x128xf32>
    %cst = arith.constant dense<0.000000e+00> : vector<16x128xf32>
    %2 = tpu.matmul %0, %1, %cst {dimension_numbers = #tpu.dot_dimension_numbers<[1], [0], [0], [1], [0, 0, 1, 1], [], []>} : vector<16x128xf32>, vector<128x128xf32>, vector<16x128xf32> -> vector<16x128xf32>
    %cst_3 = arith.constant dense<0.000000e+00> : vector<16xf32>
    %3 = vector.multi_reduction <add>, %2, %cst_3 [1] : vector<16x128xf32> to vector<16xf32>
    %4 = vector.shape_cast %3 : vector<16xf32> to vector<16x1xf32>
    %5 = arith.mulf %2, %2 : vector<16x128xf32>
    %cst_4 = arith.constant dense<0.000000e+00> : vector<16xf32>
    %6 = vector.multi_reduction <add>, %5, %cst_4 [1] : vector<16x128xf32> to vector<16xf32>
    %7 = vector.shape_cast %6 : vector<16xf32> to vector<16x1xf32>
    %cst_5 = arith.constant 3.125000e-02 : f32
    %8 = vector.broadcast %cst_5 : f32 to vector<16x1xf32>
    %9 = arith.mulf %4, %8 : vector<16x1xf32>
    %cst_6 = arith.constant 3.125000e-02 : f32
    %10 = vector.broadcast %cst_6 : f32 to vector<16x1xf32>
    %11 = arith.mulf %7, %10 : vector<16x1xf32>
    %12 = arith.mulf %9, %9 : vector<16x1xf32>
    %13 = arith.subf %11, %12 : vector<16x1xf32>
    %14 = vector.broadcast %9 : vector<16x1xf32> to vector<16x128xf32>
    %15 = arith.subf %2, %14 : vector<16x128xf32>
    %cst_7 = arith.constant 9.99999974E-6 : f32
    %16 = vector.broadcast %cst_7 : f32 to vector<16x1xf32>
    %17 = arith.addf %13, %16 : vector<16x1xf32>
    %18 = math.rsqrt %17 : vector<16x1xf32>
    %19 = vector.broadcast %18 : vector<16x1xf32> to vector<16x128xf32>
    %20 = arith.mulf %15, %19 : vector<16x128xf32>
    %c0_8 = arith.constant 0 : index
    %c0_9 = arith.constant 0 : index
    %21 = vector.load %arg1[%c0_8, %c0_9] : memref<16x128xf32, #tpu.memory_space<vmem>>, vector<16x128xf32>
    %22 = arith.mulf %21, %20 : vector<16x128xf32>
    %c0_10 = arith.constant 0 : index
    %c0_11 = arith.constant 0 : index
    %23 = vector.load %arg4[%c0_10, %c0_11] : memref<128x128xf32, #tpu.memory_space<vmem>>, vector<128x128xf32>
    %cst_12 = arith.constant dense<0.000000e+00> : vector<16x128xf32>
    %24 = tpu.matmul %22, %23, %cst_12 {dimension_numbers = #tpu.dot_dimension_numbers<[1], [0], [0], [1], [0, 0, 1, 1], [], []>} : vector<16x128xf32>, vector<128x128xf32>, vector<16x128xf32> -> vector<16x128xf32>
    %c0_13 = arith.constant 0 : index
    %c0_14 = arith.constant 0 : index
    %25 = vector.load %arg5[%c0_13, %c0_14] : memref<1x128xf32, #tpu.memory_space<vmem>>, vector<1x128xf32>
    %26 = vector.broadcast %25 : vector<1x128xf32> to vector<16x128xf32>
    %27 = arith.addf %24, %26 : vector<16x128xf32>
    %c0_15 = arith.constant 0 : index
    %c0_16 = arith.constant 0 : index
    %28 = vector.load %arg6[%c0_15, %c0_16] : memref<16x128xf32, #tpu.memory_space<vmem>>, vector<16x128xf32>
    tpu.vector_store %arg6[%c0_15, %c0_16], %27 {strides = array<i32>} : memref<16x128xf32, #tpu.memory_space<vmem>>, vector<16x128xf32>,
    return
  }
  func.func @transform_0(%arg0: i32) -> (i32, i32) {
    %c0_i32 = arith.constant 0 : i32
    %c0_i32_0 = arith.constant 0 : i32
    return %arg0, %c0_i32 : i32, i32
  }
  func.func @transform_1(%arg0: i32) -> (i32, i32) {
    %c0_i32 = arith.constant 0 : i32
    %c0_i32_0 = arith.constant 0 : i32
    return %arg0, %c0_i32 : i32, i32
  }
  func.func @transform_2(%arg0: i32) -> (i32, i32) {
    %c0_i32 = arith.constant 0 : i32
    %c0_i32_0 = arith.constant 0 : i32
    %c0_i32_1 = arith.constant 0 : i32
    return %c0_i32, %c0_i32_0 : i32, i32
  }
  func.func @transform_3(%arg0: i32) -> (i32, i32) {
    %c0_i32 = arith.constant 0 : i32
    %c0_i32_0 = arith.constant 0 : i32
    %c0_i32_1 = arith.constant 0 : i32
    return %c0_i32, %c0_i32_0 : i32, i32
  }
  func.func @transform_4(%arg0: i32) -> (i32, i32) {
    %c0_i32 = arith.constant 0 : i32
    %c0_i32_0 = arith.constant 0 : i32
    %c0_i32_1 = arith.constant 0 : i32
    return %c0_i32, %c0_i32_0 : i32, i32
  }
  func.func @transform_5(%arg0: i32) -> (i32, i32) {
    %c0_i32 = arith.constant 0 : i32
    %c0_i32_0 = arith.constant 0 : i32
    return %arg0, %c0_i32 : i32, i32
  }
}

</mosaic_0001>

<llo_original>
// kernel: tpu_custom_call.1
$region0: #{tpu_custom_call.1}
  #allocation0 [shape = 'u32[]', space=smem, size = 0x4, offset = 0x4, fixed_abs, tag = 'smem constant byte address 0x4 - core index']
  #allocation1 [shape = 'u32[144,128]{1,0:T(1,128)}', space=vmem, size = 0x12000, scoped, tag = 'internal scratch']
  %s0 = inlined_call_operand.hbm [shape: f32[16,128], index: 0, kind: input, shape index: {}]
  %s1 = inlined_call_operand.hbm [shape: f32[16,128], index: 1, kind: input, shape index: {}]
  %s2 = inlined_call_operand.hbm [shape: f32[128,128], index: 2, kind: input, shape index: {}]
  %s3 = inlined_call_operand.hbm [shape: f32[128,128], index: 3, kind: input, shape index: {}]
  %s4 = inlined_call_operand.vmem [shape: f32[1,128], index: 4, kind: input, shape index: {}]
  %s5 = inlined_call_operand.hbm [shape: f32[16,128], index: 5, kind: output, shape index: {}]
  %s6 = sld [smem:[#allocation0]]
  $region46: #{tpu_custom_call.1} parent=0
    _
  %s8 = ssub.s32 1, %s6
  %s9 = scalar_select 0, %s8, %s6
  $region1: #{tpu_custom_call.1} parent=0
    #allocation2 [shape = 'u8[8192]{0}', space=vmem, size = 0x2000, scoped, tag = 'input window, operand 0, single buffered']
    #allocation3 [shape = 's32[1]{0}', space=sflag, size = 0x4, scoped, tag = 'scoped memory for tpu_custom_call.1']
    #allocation4 [shape = 's32[1]{0}', space=sflag, size = 0x4, scoped, tag = 'scoped memory for tpu_custom_call.1']
    #allocation5 [shape = 'u8[8192]{0}', space=vmem, size = 0x2000, scoped, tag = 'input window, operand 1, single buffered']
    #allocation6 [shape = 's32[1]{0}', space=sflag, size = 0x4, scoped, tag = 'scoped memory for tpu_custom_call.1']
    #allocation7 [shape = 'u8[65536]{0}', space=vmem, size = 0x10000, scoped, tag = 'input window, operand 2, single buffered']
    #allocation8 [shape = 'u8[65536]{0}', space=vmem, size = 0x10000, scoped, tag = 'input window, operand 3, single buffered']
    #allocation9 [shape = 's32[1]{0}', space=sflag, size = 0x4, scoped, tag = 'scoped memory for tpu_custom_call.1']
    #allocation10 [shape = 'u8[8192]{0}', space=vmem, size = 0x2000, scoped, tag = 'output window, operand 0, single buffered']
    %10 = vsyncpa [#allocation3], 0
    %11 = vsyncpa [#allocation6], 0
    %12 = vsyncpa [#allocation9], 0
    %13 = vsyncpa [#allocation4], 0
    // Predicated region
    $region2: #{tpu_custom_call.1} parent=1 // pred_check
      _
    $region3: #{tpu_custom_call.1} parent=1 // pred_check_branch
      %15 = sbr.rel (0) target = $region5
    $region4: #{tpu_custom_call.1} parent=1 // pred_region
      %s17 = ssub.s32 256, 256
      %18 = vsyncadd [#allocation3], %s17
      %s19 = sshll.u32 [#allocation2], 4
      %s20 = int_to_ptr.vmem [resolvable:$true] %s19
      %25 = dma.hbm_to_vmem [thread:$0]  %s0, 256, %s20, [#allocation3], 128, 128, 8
    $region5: #{tpu_custom_call.1} parent=1 // pred_fallthru
      _
    // Predicated region
    $region6: #{tpu_custom_call.1} parent=1 // pred_check
      _
    $region7: #{tpu_custom_call.1} parent=1 // pred_check_branch
      %27 = sbr.rel (0) target = $region9
    $region8: #{tpu_custom_call.1} parent=1 // pred_region
      %s29 = ssub.s32 256, 256
      %30 = vsyncadd [#allocation6], %s29
      %s31 = sshll.u32 [#allocation5], 4
      %s32 = int_to_ptr.vmem [resolvable:$true] %s31
      %37 = dma.hbm_to_vmem [thread:$0]  %s1, 256, %s32, [#allocation6], 128, 128, 8
    $region9: #{tpu_custom_call.1} parent=1 // pred_fallthru
      _
    // Predicated region
    $region10: #{tpu_custom_call.1} parent=1 // pred_check
      _
    $region11: #{tpu_custom_call.1} parent=1 // pred_check_branch
      %39 = sbr.rel (0) target = $region13
    $region12: #{tpu_custom_call.1} parent=1 // pred_region
      %s41 = ssub.s32 2048, 2048
      %42 = vsyncadd [#allocation6], %s41
      %s43 = sshll.u32 [#allocation7], 4
      %s44 = int_to_ptr.vmem [resolvable:$true] %s43
      %49 = dma.hbm_to_vmem [thread:$0]  %s2, 2048, %s44, [#allocation6], 128, 128, 8
    $region13: #{tpu_custom_call.1} parent=1 // pred_fallthru
      _
    // Predicated region
    $region14: #{tpu_custom_call.1} parent=1 // pred_check
      _
    $region15: #{tpu_custom_call.1} parent=1 // pred_check_branch
      %51 = sbr.rel (0) target = $region17
    $region16: #{tpu_custom_call.1} parent=1 // pred_region
      %s53 = ssub.s32 2048, 2048
      %54 = vsyncadd [#allocation9], %s53
      %s55 = sshll.u32 [#allocation8], 4
      %s56 = int_to_ptr.vmem [resolvable:$true] %s55
      %61 = dma.hbm_to_vmem [thread:$0]  %s3, 2048, %s56, [#allocation9], 128, 128, 8
    $region17: #{tpu_custom_call.1} parent=1 // pred_fallthru
      _
    // Predicated region
    $region18: #{tpu_custom_call.1} parent=1 // pred_check
      _
    $region19: #{tpu_custom_call.1} parent=1 // pred_check_branch
      %63 = sbr.rel (0) target = $region21
    $region20: #{tpu_custom_call.1} parent=1 // pred_region
      _
    $region21: #{tpu_custom_call.1} parent=1 // pred_fallthru
      _
    // Predicated region
    $region22: #{tpu_custom_call.1} parent=1 // pred_check
      _
    $region23: #{tpu_custom_call.1} parent=1 // pred_check_branch
      %65 = sbr.rel (0) target = $region25
    $region24: #{tpu_custom_call.1} parent=1 // pred_region
      %66 = dma.done [#allocation3], 256
    $region25: #{tpu_custom_call.1} parent=1 // pred_fallthru
      _
    // Predicated region
    $region26: #{tpu_custom_call.1} parent=1 // pred_check
      _
    $region27: #{tpu_custom_call.1} parent=1 // pred_check_branch
      %68 = sbr.rel (0) target = $region29
    $region28: #{tpu_custom_call.1} parent=1 // pred_region
      %69 = dma.done [#allocation6], 256
    $region29: #{tpu_custom_call.1} parent=1 // pred_fallthru
      _
    // Predicated region
    $region30: #{tpu_custom_call.1} parent=1 // pred_check
      _
    $region31: #{tpu_custom_call.1} parent=1 // pred_check_branch
      %71 = sbr.rel (0) target = $region33
    $region32: #{tpu_custom_call.1} parent=1 // pred_region
      %72 = dma.done [#allocation6], 2048
    $region33: #{tpu_custom_call.1} parent=1 // pred_fallthru
      _
    // Predicated region
    $region34: #{tpu_custom_call.1} parent=1 // pred_check
      _
    $region35: #{tpu_custom_call.1} parent=1 // pred_check_branch
      %74 = sbr.rel (0) target = $region37
    $region36: #{tpu_custom_call.1} parent=1 // pred_region
      %75 = dma.done [#allocation9], 2048
    $region37: #{tpu_custom_call.1} parent=1 // pred_fallthru
      _
    %v76 = vld [vmem:[#allocation5] sm:$0xff]
    %v77 = vld [vmem:[#allocation5 + $0x8] sm:$0xff]
    %v78 = vld [vmem:[#allocation7] sm:$0xff]
    %v79 = vld [vmem:[#allocation7 + $0x8] sm:$0xff]
    %v80 = vld [vmem:[#allocation7 + $0x10] sm:$0xff]
    %v81 = vld [vmem:[#allocation7 + $0x18] sm:$0xff]
    %v82 = vld [vmem:[#allocation7 + $0x20] sm:$0xff]
    %v83 = vld [vmem:[#allocation7 + $0x28] sm:$0xff]
    %v84 = vld [vmem:[#allocation7 + $0x30] sm:$0xff]
    %v85 = vld [vmem:[#allocation7 + $0x38] sm:$0xff]
    %v86 = vld [vmem:[#allocation7 + $0x40] sm:$0xff]
    %v87 = vld [vmem:[#allocation7 + $0x48] sm:$0xff]
    %v88 = vld [vmem:[#allocation7 + $0x50] sm:$0xff]
    %v89 = vld [vmem:[#allocation7 + $0x58] sm:$0xff]
    %v90 = vld [vmem:[#allocation7 + $0x60] sm:$0xff]
    %v91 = vld [vmem:[#allocation7 + $0x68] sm:$0xff]
    %v92 = vld [vmem:[#allocation7 + $0x70] sm:$0xff]
    %v93 = vld [vmem:[#allocation7 + $0x78] sm:$0xff]
    %94 = vmatprep.subr.mxu0 0.0
    %95 = vmatpush1.msra.mxu0 %v78
    %96 = vmatprep.subr.mxu0 0.0
    %97 = vmatpush1.msra.mxu0 %v79
    %98 = vmatprep.subr.mxu0 0.0
    %99 = vmatpush1.msra.mxu0 %v80
    %100 = vmatprep.subr.mxu0 0.0
    %101 = vmatpush1.msra.mxu0 %v81
    %102 = vmatprep.subr.mxu0 0.0
    %103 = vmatpush1.msra.mxu0 %v82
    %104 = vmatprep.subr.mxu0 0.0
    %105 = vmatpush1.msra.mxu0 %v83
    %106 = vmatprep.subr.mxu0 0.0
    %107 = vmatpush1.msra.mxu0 %v84
    %108 = vmatprep.subr.mxu0 0.0
    %109 = vmatpush1.msra.mxu0 %v85
    %110 = vmatprep.subr.mxu0 0.0
    %111 = vmatpush1.msra.mxu0 %v86
    %112 = vmatprep.subr.mxu0 0.0
    %113 = vmatpush1.msra.mxu0 %v87
    %114 = vmatprep.subr.mxu0 0.0
    %115 = vmatpush1.msra.mxu0 %v88
    %116 = vmatprep.subr.mxu0 0.0
    %117 = vmatpush1.msra.mxu0 %v89
    %118 = vmatprep.subr.mxu0 0.0
    %119 = vmatpush1.msra.mxu0 %v90
    %120 = vmatprep.subr.mxu0 0.0
    %121 = vmatpush1.msra.mxu0 %v91
    %122 = vmatprep.subr.mxu0 0.0
    %123 = vmatpush1.msra.mxu0 %v92
    %124 = vmatprep.subr.mxu0 0.0
    %125 = vmatpush1.msra.mxu0 %v93
    %126 = vmatprep.subr.mxu0 0.0
    %127 = vmatpush1.msra.mxu0 0.0
    %128 = vmatprep.subr.mxu0 0.0
    %129 = vmatpush1.msra.mxu0 0.0
    %130 = vmatprep.subr.mxu0 0.0
    %131 = vmatpush1.msra.mxu0 0.0
    %132 = vmatprep.subr.mxu0 0.0
    %133 = vmatpush1.msra.mxu0 0.0
    %134 = vmatprep.subr.mxu0 0.0
    %135 = vmatpush1.msra.mxu0 0.0
    %136 = vmatprep.subr.mxu0 0.0
    %137 = vmatpush1.msra.mxu0 0.0
    %138 = vmatprep.subr.mxu0 0.0
    %139 = vmatpush1.msra.mxu0 0.0
    %140 = vmatprep.subr.mxu0 0.0
    %141 = vmatpush1.msra.mxu0 0.0
    %142 = vmatprep.subr.mxu0 0.0
    %143 = vmatpush1.msra.mxu0 0.0
    %144 = vmatprep.subr.mxu0 0.0
    %145 = vmatpush1.msra.mxu0 0.0
    %146 = vmatprep.subr.mxu0 0.0
    %147 = vmatpush1.msra.mxu0 0.0
    %148 = vmatprep.subr.mxu0 0.0
    %149 = vmatpush1.msra.mxu0 0.0
    %150 = vmatprep.subr.mxu0 0.0
    %151 = vmatpush1.msra.mxu0 0.0
    %152 = vmatprep.subr.mxu0 0.0
    %153 = vmatpush1.msra.mxu0 0.0
    %154 = vmatprep.subr.mxu0 0.0
    %155 = vmatpush1.msra.mxu0 0.0
    %156 = vmatprep.subr.mxu0 0.0
    %157 = vmatpush1.msra.mxu0 0.0
    %158 = vmatprep.mubr.f32.mxu0 0.0
    %159 = vmatmul.mubr.f32.gmra.mrb[0].mxu0 %v76
    %v160 = vpop.f32.mrb[0].mxu0
    %v161 = vadd.f32 0.0, %v160
    %v162 = vpop.f32.mrb[0].mxu0
    %163 = vmatprep.mubr.f32.mxu0 0.0
    %164 = vmatmul.mubr.f32.gmra.mrb[0].mxu0 %v77
    %v165 = vpop.f32.mrb[0].mxu0
    %v166 = vadd.f32 0.0, %v165
    %v167 = vpop.f32.mrb[0].mxu0
    %168 = vdwg.mxu0
    %169 = vadd.xlane.f32.xlu0 %v161
    %v170 = vpop.xlane.xlu0 %169
    %171 = vadd.xlane.f32.xlu0 %v166
    %v172 = vpop.xlane.xlu0 %171
    %v173 = vmul.f32 %v161, %v161
    %v174 = vmul.f32 %v166, %v166
    %175 = vadd.xlane.f32.xlu0 %v173
    %v176 = vpop.xlane.xlu0 %175
    %177 = vadd.xlane.f32.xlu0 %v174
    %v178 = vpop.xlane.xlu0 %177
    %v179 = vmul.f32 %v170, 0.03125
    %v180 = vmul.f32 %v172, 0.03125
    %v181 = vmul.f32 %v176, 0.03125
    %v182 = vmul.f32 %v178, 0.03125
    %v183 = vmul.f32 %v179, %v179
    %v184 = vmul.f32 %v180, %v180
    %v185 = vsub.f32 %v181, %v183
    %v186 = vsub.f32 %v182, %v184
    %v187 = vsub.f32 %v161, %v179
    %v188 = vsub.f32 %v166, %v180
    %v189 = vadd.f32 %v185, 1e-05
    %v190 = vadd.f32 %v186, 1e-05
    %v191 = vrsqrt.pop %v189
    %v192 = vrsqrt.pop %v190
    %v193 = vmul.f32 %v187, %v191
    %v194 = vmul.f32 %v188, %v192
    %v195 = vld [vmem:[#allocation2] sm:$0xff]
    %v196 = vld [vmem:[#allocation2 + $0x8] sm:$0xff]
    %v197 = vmul.f32 %v195, %v193
    %v198 = vmul.f32 %v196, %v194
    %v199 = vld [vmem:[#allocation8] sm:$0xff]
    %v200 = vld [vmem:[#allocation8 + $0x8] sm:$0xff]
    %v201 = vld [vmem:[#allocation8 + $0x10] sm:$0xff]
    %v202 = vld [vmem:[#allocation8 + $0x18] sm:$0xff]
    %v203 = vld [vmem:[#allocation8 + $0x20] sm:$0xff]
    %v204 = vld [vmem:[#allocation8 + $0x28] sm:$0xff]
    %v205 = vld [vmem:[#allocation8 + $0x30] sm:$0xff]
    %v206 = vld [vmem:[#allocation8 + $0x38] sm:$0xff]
    %v207 = vld [vmem:[#allocation8 + $0x40] sm:$0xff]
    %v208 = vld [vmem:[#allocation8 + $0x48] sm:$0xff]
    %v209 = vld [vmem:[#allocation8 + $0x50] sm:$0xff]
    %v210 = vld [vmem:[#allocation8 + $0x58] sm:$0xff]
    %v211 = vld [vmem:[#allocation8 + $0x60] sm:$0xff]
    %v212 = vld [vmem:[#allocation8 + $0x68] sm:$0xff]
    %v213 = vld [vmem:[#allocation8 + $0x70] sm:$0xff]
    %v214 = vld [vmem:[#allocation8 + $0x78] sm:$0xff]
    %v215 = vld [vmem:[%s4] sm:$0x1]
    %v217 = vlaneseq
    %v218 = vshrl.u32 %v217, 7
    %v219 = vsub.s32 0, %v218
    %v220 = vrot.slane %v215, %v219
    %222 = vmatprep.subr.mxu0 0.0
    %223 = vmatpush1.msra.mxu0 %v199
    %224 = vmatprep.subr.mxu0 0.0
    %225 = vmatpush1.msra.mxu0 %v200
    %226 = vmatprep.subr.mxu0 0.0
    %227 = vmatpush1.msra.mxu0 %v201
    %228 = vmatprep.subr.mxu0 0.0
    %229 = vmatpush1.msra.mxu0 %v202
    %230 = vmatprep.subr.mxu0 0.0
    %231 = vmatpush1.msra.mxu0 %v203
    %232 = vmatprep.subr.mxu0 0.0
    %233 = vmatpush1.msra.mxu0 %v204
    %234 = vmatprep.subr.mxu0 0.0
    %235 = vmatpush1.msra.mxu0 %v205
    %236 = vmatprep.subr.mxu0 0.0
    %237 = vmatpush1.msra.mxu0 %v206
    %238 = vmatprep.subr.mxu0 0.0
    %239 = vmatpush1.msra.mxu0 %v207
    %240 = vmatprep.subr.mxu0 0.0
    %241 = vmatpush1.msra.mxu0 %v208
    %242 = vmatprep.subr.mxu0 0.0
    %243 = vmatpush1.msra.mxu0 %v209
    %244 = vmatprep.subr.mxu0 0.0
    %245 = vmatpush1.msra.mxu0 %v210
    %246 = vmatprep.subr.mxu0 0.0
    %247 = vmatpush1.msra.mxu0 %v211
    %248 = vmatprep.subr.mxu0 0.0
    %249 = vmatpush1.msra.mxu0 %v212
    %250 = vmatprep.subr.mxu0 0.0
    %251 = vmatpush1.msra.mxu0 %v213
    %252 = vmatprep.subr.mxu0 0.0
    %253 = vmatpush1.msra.mxu0 %v214
    %254 = vmatprep.subr.mxu0 0.0
    %255 = vmatpush1.msra.mxu0 0.0
    %256 = vmatprep.subr.mxu0 0.0
    %257 = vmatpush1.msra.mxu0 0.0
    %258 = vmatprep.subr.mxu0 0.0
    %259 = vmatpush1.msra.mxu0 0.0
    %260 = vmatprep.subr.mxu0 0.0
    %261 = vmatpush1.msra.mxu0 0.0
    %262 = vmatprep.subr.mxu0 0.0
    %263 = vmatpush1.msra.mxu0 0.0
    %264 = vmatprep.subr.mxu0 0.0
    %265 = vmatpush1.msra.mxu0 0.0
    %266 = vmatprep.subr.mxu0 0.0
    %267 = vmatpush1.msra.mxu0 0.0
    %268 = vmatprep.subr.mxu0 0.0
    %269 = vmatpush1.msra.mxu0 0.0
    %270 = vmatprep.subr.mxu0 0.0
    %271 = vmatpush1.msra.mxu0 0.0
    %272 = vmatprep.subr.mxu0 0.0
    %273 = vmatpush1.msra.mxu0 0.0
    %274 = vmatprep.subr.mxu0 0.0
    %275 = vmatpush1.msra.mxu0 0.0
    %276 = vmatprep.subr.mxu0 0.0
    %277 = vmatpush1.msra.mxu0 0.0
    %278 = vmatprep.subr.mxu0 0.0
    %279 = vmatpush1.msra.mxu0 0.0
    %280 = vmatprep.subr.mxu0 0.0
    %281 = vmatpush1.msra.mxu0 0.0
    %282 = vmatprep.subr.mxu0 0.0
    %283 = vmatpush1.msra.mxu0 0.0
    %284 = vmatprep.subr.mxu0 0.0
    %285 = vmatpush1.msra.mxu0 0.0
    %286 = vmatprep.mubr.f32.mxu0 0.0
    %287 = vmatmul.mubr.f32.gmra.mrb[0].mxu0 %v197
    %v288 = vpop.f32.mrb[0].mxu0
    %v289 = vadd.f32 %v220, %v288
    %v290 = vpop.f32.mrb[0].mxu0
    %291 = vmatprep.mubr.f32.mxu0 0.0
    %292 = vmatmul.mubr.f32.gmra.mrb[0].mxu0 %v198
    %v293 = vpop.f32.mrb[0].mxu0
    %v294 = vadd.f32 %v220, %v293
    %v295 = vpop.f32.mrb[0].mxu0
    %296 = vdwg.mxu0
    %297 = vst [vmem:[#allocation10] sm:$0xff] %v289
    %298 = vst [vmem:[#allocation10 + $0x8] sm:$0xff] %v294
    // Predicated region
    $region38: #{tpu_custom_call.1} parent=1 // pred_check
      _
    $region39: #{tpu_custom_call.1} parent=1 // pred_check_branch
      %300 = sbr.rel (0) target = $region41
    $region40: #{tpu_custom_call.1} parent=1 // pred_region
      %s302 = ssub.s32 256, 256
      %303 = vsyncadd [#allocation4], %s302
      %s304 = sshll.u32 [#allocation10], 4
      %s305 = int_to_ptr.vmem [resolvable:$true] %s304
      %310 = dma.vmem_to_hbm [thread:$0]  %s305, 256, %s5, [#allocation4], 128, 128, 8
    $region41: #{tpu_custom_call.1} parent=1 // pred_fallthru
      _
    // Predicated region
    $region42: #{tpu_custom_call.1} parent=1 // pred_check
      _
    $region43: #{tpu_custom_call.1} parent=1 // pred_check_branch
      %312 = sbr.rel (0) target = $region45
    $region44: #{tpu_custom_call.1} parent=1 // pred_region
      %313 = dma.done [#allocation4], 256
    $region45: #{tpu_custom_call.1} parent=1 // pred_fallthru
      _
    %314 = vsyncpa [#allocation3], 1
    %315 = vsyncpa [#allocation6], 1
    %316 = vsyncpa [#allocation9], 1
    %317 = vsyncpa [#allocation4], 1

</llo_original>
